<compile_context>
chip_gen: v7x
topology: tpu7x:2x2x1
jax: 0.10.0
libtpu: 0.0.40
codegen_flags: <defaults>
</compile_context>

<pallas_src>
import jax
import jax.numpy as jnp
from jax.experimental import pallas as pl
from jax.experimental.pallas import tpu as pltpu


def _dice_sums_kernel(pred_ref, tgt_ref, inter_ref, psum_ref, tsum_ref):
    """Per-row (i.e. per (n,c) slice) reductions over the flattened H*W axis."""
    p = pred_ref[...].astype(jnp.float32)                       # (TB, HW)
    t = tgt_ref[...].astype(jnp.float32)                        # (TB, HW)
    inter_ref[...] = jnp.sum(p * t, axis=-1, keepdims=True)     # (TB, 1)
    psum_ref[...] = jnp.sum(p * p, axis=-1, keepdims=True)      # (TB, 1)
    tsum_ref[...] = jnp.sum(t * t, axis=-1, keepdims=True)      # (TB, 1)


def _round_up(x: int, m: int) -> int:
    return ((x + m - 1) // m) * m


def eldice_loss(pred: jnp.ndarray, target: jnp.ndarray) -> jnp.ndarray:
    """Equivalent of the PyTorch ELDiceLoss.forward (NCHW inputs, same shape)."""
    n, c, h, w = pred.shape
    assert target.shape == pred.shape
    nc, hw = n * c, h * w

    # Lane-dense layout: one row per (n, c) slice, full H*W along lanes.
    p2 = pred.reshape(nc, hw)
    t2 = target.reshape(nc, hw)

    itemsize = jnp.dtype(pred.dtype).itemsize
    # ~2 MiB per input block (x2 inputs x2 pipeline buffers ~ 8 MiB VMEM),
    # comfortably inside v7x's 64 MiB VMEM / default scoped limits.
    row_budget = (2 * 1024 * 1024) // max(1, hw * itemsize)
    tb = max(8, min(int(row_budget), 1024))
    tb = (tb // 8) * 8
    tb = min(tb, _round_up(nc, 8))
    nc_pad = _round_up(nc, tb)
    if nc_pad != nc:
        # Zero rows contribute zero to all three sums; sliced off below.
        p2 = jnp.pad(p2, ((0, nc_pad - nc), (0, 0)))
        t2 = jnp.pad(t2, ((0, nc_pad - nc), (0, 0)))

    grid = (nc_pad // tb,)

    out_shape = tuple(
        jax.ShapeDtypeStruct((nc_pad, 1), jnp.float32) for _ in range(3)
    )
    out_specs = tuple(
        pl.BlockSpec((tb, 1), lambda i: (i, 0)) for _ in range(3)
    )

    cost = pl.CostEstimate(
        flops=6 * nc * hw,                               # 3 muls + 3 adds / elem
        transcendentals=0,
        bytes_accessed=2 * nc_pad * hw * itemsize + 3 * nc_pad * 4,
    )

    inter, psum, tsum = pl.pallas_call(
        _dice_sums_kernel,
        out_shape=out_shape,
        grid_spec=pltpu.PrefetchScalarGridSpec(
            num_scalar_prefetch=0,
            grid=grid,
            in_specs=[
                pl.BlockSpec((tb, hw), lambda i: (i, 0)),
                pl.BlockSpec((tb, hw), lambda i: (i, 0)),
            ],
            out_specs=out_specs,
        ),
        compiler_params=pltpu.CompilerParams(
            dimension_semantics=("parallel",),
        ),
        cost_estimate=cost,
    )(p2, t2)

    inter = inter[:nc, 0].reshape(n, c)
    psum = psum[:nc, 0].reshape(n, c)
    tsum = tsum[:nc, 0].reshape(n, c)

    smooth = 1.0
    dice_per = 2.0 * inter / (psum + tsum + smooth)      # (n, c)
    dice = jnp.sum(dice_per, axis=1) / c                 # (n,)
    loss = jnp.clip(
        jnp.power(-jnp.log(dice + 1e-05), 0.3).mean(), 0.0, 2.0
    )
    return loss


def _eldice_ref(pred, target):
    """Pure-JAX mirror of the PyTorch reference, for verification."""
    n, c = pred.shape[:2]
    smooth = 1.0
    dice = 0.0
    for i in range(c):
        dice = dice + 2.0 * (pred[:, i] * target[:, i]).sum(axis=(1, 2)) / (
            (pred[:, i] ** 2).sum(axis=(1, 2))
            + (target[:, i] ** 2).sum(axis=(1, 2))
            + smooth
        )
    dice = dice / c
    return jnp.clip(jnp.power(-jnp.log(dice + 1e-05), 0.3).mean(), 0.0, 2.0)


if __name__ == "__main__":
    key = jax.random.PRNGKey(0)
    k1, k2 = jax.random.split(key)
    # Dice loss operates on probabilities / masks: pred in [0,1], binary target.
    pred = jax.random.uniform(k1, (2, 4, 16, 16), dtype=jnp.float32)
    target = (jax.random.uniform(k2, (2, 4, 16, 16)) > 0.5).astype(jnp.float32)

    loss = eldice_loss(pred, target)
    jax.block_until_ready(loss)

    ref = _eldice_ref(pred, target)
    assert loss.shape == ()
    assert jnp.isfinite(loss)
    assert jnp.allclose(loss, ref, rtol=1e-5, atol=1e-6), (loss, ref)
    print("KERNEL_OK")
</pallas_src>

<mosaic_0001>
module attributes {stable_mosaic.version = 11 : i64} {
  func.func @_dice_sums_kernel(%arg0: i32, %arg1: memref<8x256xf32, #tpu.memory_space<vmem>>, %arg2: memref<8x256xf32, #tpu.memory_space<vmem>>, %arg3: memref<8x1xf32, #tpu.memory_space<vmem>>, %arg4: memref<8x1xf32, #tpu.memory_space<vmem>>, %arg5: memref<8x1xf32, #tpu.memory_space<vmem>>) attributes {dimension_semantics = [#tpu.dimension_semantics<parallel>], iteration_bounds = array<i64: 1>, scalar_prefetch = 0 : i64, scratch_operands = 0 : i64, tpu.core_type = #tpu.core_type<tc>, window_params = [{transform_indices = @transform_0, window_bounds = array<i64: 8, 256>}, {transform_indices = @transform_1, window_bounds = array<i64: 8, 256>}, {transform_indices = @transform_2, window_bounds = array<i64: 8, 1>}, {transform_indices = @transform_3, window_bounds = array<i64: 8, 1>}, {transform_indices = @transform_4, window_bounds = array<i64: 8, 1>}]} {
    %c0 = arith.constant 0 : index
    %c0_0 = arith.constant 0 : index
    %0 = vector.load %arg1[%c0, %c0_0] : memref<8x256xf32, #tpu.memory_space<vmem>>, vector<8x256xf32>
    %c0_1 = arith.constant 0 : index
    %c0_2 = arith.constant 0 : index
    %1 = vector.load %arg2[%c0_1, %c0_2] : memref<8x256xf32, #tpu.memory_space<vmem>>, vector<8x256xf32>
    %2 = arith.mulf %0, %1 : vector<8x256xf32>
    %cst = arith.constant dense<0.000000e+00> : vector<8xf32>
    %3 = vector.multi_reduction <add>, %2, %cst [1] : vector<8x256xf32> to vector<8xf32>
    %4 = vector.shape_cast %3 : vector<8xf32> to vector<8x1xf32>
    %c0_3 = arith.constant 0 : index
    %c0_4 = arith.constant 0 : index
    %5 = vector.load %arg3[%c0_3, %c0_4] : memref<8x1xf32, #tpu.memory_space<vmem>>, vector<8x1xf32>
    tpu.vector_store %arg3[%c0_3, %c0_4], %4 {strides = array<i32>} : memref<8x1xf32, #tpu.memory_space<vmem>>, vector<8x1xf32>,
    %6 = arith.mulf %0, %0 : vector<8x256xf32>
    %cst_5 = arith.constant dense<0.000000e+00> : vector<8xf32>
    %7 = vector.multi_reduction <add>, %6, %cst_5 [1] : vector<8x256xf32> to vector<8xf32>
    %8 = vector.shape_cast %7 : vector<8xf32> to vector<8x1xf32>
    %c0_6 = arith.constant 0 : index
    %c0_7 = arith.constant 0 : index
    %9 = vector.load %arg4[%c0_6, %c0_7] : memref<8x1xf32, #tpu.memory_space<vmem>>, vector<8x1xf32>
    tpu.vector_store %arg4[%c0_6, %c0_7], %8 {strides = array<i32>} : memref<8x1xf32, #tpu.memory_space<vmem>>, vector<8x1xf32>,
    %10 = arith.mulf %1, %1 : vector<8x256xf32>
    %cst_8 = arith.constant dense<0.000000e+00> : vector<8xf32>
    %11 = vector.multi_reduction <add>, %10, %cst_8 [1] : vector<8x256xf32> to vector<8xf32>
    %12 = vector.shape_cast %11 : vector<8xf32> to vector<8x1xf32>
    %c0_9 = arith.constant 0 : index
    %c0_10 = arith.constant 0 : index
    %13 = vector.load %arg5[%c0_9, %c0_10] : memref<8x1xf32, #tpu.memory_space<vmem>>, vector<8x1xf32>
    tpu.vector_store %arg5[%c0_9, %c0_10], %12 {strides = array<i32>} : memref<8x1xf32, #tpu.memory_space<vmem>>, vector<8x1xf32>,
    return
  }
  func.func @transform_0(%arg0: i32) -> (i32, i32) {
    %c0_i32 = arith.constant 0 : i32
    %c0_i32_0 = arith.constant 0 : i32
    return %arg0, %c0_i32 : i32, i32
  }
  func.func @transform_1(%arg0: i32) -> (i32, i32) {
    %c0_i32 = arith.constant 0 : i32
    %c0_i32_0 = arith.constant 0 : i32
    return %arg0, %c0_i32 : i32, i32
  }
  func.func @transform_2(%arg0: i32) -> (i32, i32) {
    %c0_i32 = arith.constant 0 : i32
    %c0_i32_0 = arith.constant 0 : i32
    return %arg0, %c0_i32 : i32, i32
  }
  func.func @transform_3(%arg0: i32) -> (i32, i32) {
    %c0_i32 = arith.constant 0 : i32
    %c0_i32_0 = arith.constant 0 : i32
    return %arg0, %c0_i32 : i32, i32
  }
  func.func @transform_4(%arg0: i32) -> (i32, i32) {
    %c0_i32 = arith.constant 0 : i32
    %c0_i32_0 = arith.constant 0 : i32
    return %arg0, %c0_i32 : i32, i32
  }
}

</mosaic_0001>

<llo_original>
// kernel: tpu_custom_call.1
$region0: #{tpu_custom_call.1}
  #allocation0 [shape = 'u32[]', space=smem, size = 0x4, offset = 0x4, fixed_abs, tag = 'smem constant byte address 0x4 - core index']
  #allocation1 [shape = 'u32[144,128]{1,0:T(1,128)}', space=vmem, size = 0x12000, scoped, tag = 'internal scratch']
  %s0 = inlined_call_operand.hbm [shape: f32[8,256], index: 0, kind: input, shape index: {}]
  %s1 = inlined_call_operand.hbm [shape: f32[8,256], index: 1, kind: input, shape index: {}]
  %s2 = inlined_call_operand.vmem [shape: f32[8,1], index: 2, kind: output, shape index: {0}]
  %s3 = inlined_call_operand.vmem [shape: f32[8,1], index: 3, kind: output, shape index: {1}]
  %s4 = inlined_call_operand.vmem [shape: f32[8,1], index: 4, kind: output, shape index: {2}]
  %5 = xla_tuple %s2, %s3, %s4
  %s6 = sld [smem:[#allocation0]]
  $region42: #{tpu_custom_call.1} parent=0
    _
  %s8 = ssub.s32 1, %s6
  %s9 = scalar_select 0, %s8, %s6
  $region1: #{tpu_custom_call.1} parent=0
    #allocation2 [shape = 'u8[8192]{0}', space=vmem, size = 0x2000, scoped, tag = 'input window, operand 0, single buffered']
    #allocation3 [shape = 's32[1]{0}', space=sflag, size = 0x4, scoped, tag = 'scoped memory for tpu_custom_call.1']
    #allocation4 [shape = 'u8[8192]{0}', space=vmem, size = 0x2000, scoped, tag = 'input window, operand 1, single buffered']
    #allocation5 [shape = 's32[1]{0}', space=sflag, size = 0x4, scoped, tag = 'scoped memory for tpu_custom_call.1']
    %10 = vsyncpa [#allocation3], 0
    %11 = vsyncpa [#allocation5], 0
    // Predicated region
    $region2: #{tpu_custom_call.1} parent=1 // pred_check
      _
    $region3: #{tpu_custom_call.1} parent=1 // pred_check_branch
      %13 = sbr.rel (0) target = $region5
    $region4: #{tpu_custom_call.1} parent=1 // pred_region
      %s15 = ssub.s32 256, 256
      %16 = vsyncadd [#allocation3], %s15
      %s18 = sshll.u32 [#allocation2], 4
      %s19 = int_to_ptr.vmem [resolvable:$true] %s18
      %21 = dma.hbm_to_vmem [thread:$0]  %s0, 256, %s19, [#allocation3]
    $region5: #{tpu_custom_call.1} parent=1 // pred_fallthru
      _
    // Predicated region
    $region6: #{tpu_custom_call.1} parent=1 // pred_check
      _
    $region7: #{tpu_custom_call.1} parent=1 // pred_check_branch
      %23 = sbr.rel (0) target = $region9
    $region8: #{tpu_custom_call.1} parent=1 // pred_region
      %s25 = ssub.s32 256, 256
      %26 = vsyncadd [#allocation5], %s25
      %s28 = sshll.u32 [#allocation4], 4
      %s29 = int_to_ptr.vmem [resolvable:$true] %s28
      %31 = dma.hbm_to_vmem [thread:$0]  %s1, 256, %s29, [#allocation5]
    $region9: #{tpu_custom_call.1} parent=1 // pred_fallthru
      _
    // Predicated region
    $region10: #{tpu_custom_call.1} parent=1 // pred_check
      _
    $region11: #{tpu_custom_call.1} parent=1 // pred_check_branch
      %33 = sbr.rel (0) target = $region13
    $region12: #{tpu_custom_call.1} parent=1 // pred_region
      %34 = dma.done [#allocation3], 256
    $region13: #{tpu_custom_call.1} parent=1 // pred_fallthru
      _
    // Predicated region
    $region14: #{tpu_custom_call.1} parent=1 // pred_check
      _
    $region15: #{tpu_custom_call.1} parent=1 // pred_check_branch
      %36 = sbr.rel (0) target = $region17
    $region16: #{tpu_custom_call.1} parent=1 // pred_region
      %37 = dma.done [#allocation5], 256
    $region17: #{tpu_custom_call.1} parent=1 // pred_fallthru
      _
    %v38 = vld [vmem:[#allocation2] sm:$0xff]
    %v39 = vld [vmem:[#allocation2 + $0x8] sm:$0xff]
    %v40 = vld [vmem:[#allocation4] sm:$0xff]
    %v41 = vld [vmem:[#allocation4 + $0x8] sm:$0xff]
    %v42 = vmul.f32 %v38, %v40
    %v43 = vmul.f32 %v39, %v41
    %v44 = vadd.f32 %v42, %v43
    %45 = vadd.xlane.f32.xlu0 %v44
    %v46 = vpop.xlane.xlu0 %45
    %vm47 = vcmask 7168
    %48 = vst.msk [vmem:[%s2] sm:$0xff] %vm47, %v46
    %v49 = vmul.f32 %v38, %v38
    %v50 = vmul.f32 %v39, %v39
    %v51 = vadd.f32 %v49, %v50
    %52 = vadd.xlane.f32.xlu0 %v51
    %v53 = vpop.xlane.xlu0 %52
    %54 = vst.msk [vmem:[%s3] sm:$0xff] %vm47, %v53
    %v55 = vmul.f32 %v40, %v40
    %v56 = vmul.f32 %v41, %v41
    %v57 = vadd.f32 %v55, %v56
    %58 = vadd.xlane.f32.xlu0 %v57
    %v59 = vpop.xlane.xlu0 %58
    %60 = vst.msk [vmem:[%s4] sm:$0xff] %vm47, %v59
    // Predicated region
    $region18: #{tpu_custom_call.1} parent=1 // pred_check
      _
    $region19: #{tpu_custom_call.1} parent=1 // pred_check_branch
      %62 = sbr.rel (0) target = $region21
    $region20: #{tpu_custom_call.1} parent=1 // pred_region
      _
    $region21: #{tpu_custom_call.1} parent=1 // pred_fallthru
      _
    // Predicated region
    $region22: #{tpu_custom_call.1} parent=1 // pred_check
      _
    $region23: #{tpu_custom_call.1} parent=1 // pred_check_branch
      %64 = sbr.rel (0) target = $region25
    $region24: #{tpu_custom_call.1} parent=1 // pred_region
      _
    $region25: #{tpu_custom_call.1} parent=1 // pred_fallthru
      _
    // Predicated region
    $region26: #{tpu_custom_call.1} parent=1 // pred_check
      _
    $region27: #{tpu_custom_call.1} parent=1 // pred_check_branch
      %66 = sbr.rel (0) target = $region29
    $region28: #{tpu_custom_call.1} parent=1 // pred_region
      _
    $region29: #{tpu_custom_call.1} parent=1 // pred_fallthru
      _
    // Predicated region
    $region30: #{tpu_custom_call.1} parent=1 // pred_check
      _
    $region31: #{tpu_custom_call.1} parent=1 // pred_check_branch
      %68 = sbr.rel (0) target = $region33
    $region32: #{tpu_custom_call.1} parent=1 // pred_region
      _
    $region33: #{tpu_custom_call.1} parent=1 // pred_fallthru
      _
    // Predicated region
    $region34: #{tpu_custom_call.1} parent=1 // pred_check
      _
    $region35: #{tpu_custom_call.1} parent=1 // pred_check_branch
      %70 = sbr.rel (0) target = $region37
    $region36: #{tpu_custom_call.1} parent=1 // pred_region
      _
    $region37: #{tpu_custom_call.1} parent=1 // pred_fallthru
      _
    // Predicated region
    $region38: #{tpu_custom_call.1} parent=1 // pred_check
      _
    $region39: #{tpu_custom_call.1} parent=1 // pred_check_branch
      %72 = sbr.rel (0) target = $region41
    $region40: #{tpu_custom_call.1} parent=1 // pred_region
      _
    $region41: #{tpu_custom_call.1} parent=1 // pred_fallthru
      _
    %73 = vsyncpa [#allocation3], 1
    %74 = vsyncpa [#allocation5], 1

</llo_original>
